<compile_context>
chip_gen: v6e
topology: v6e:2x2x1
jax: 0.10.0
libtpu: 0.0.40
codegen_flags: <defaults>
</compile_context>

<pallas_src>
import functools

import jax
import jax.numpy as jnp
from jax import lax
from jax.experimental import pallas as pl
from jax.experimental.pallas import tpu as pltpu


# ----------------------------------------------------------------------------
# Fused kernel: whole batch in one invocation (grid = (1,)).
# ----------------------------------------------------------------------------
def _decoder_fused_kernel(x_ref, w1_ref, s1_ref, b1_ref, w2_ref, s2_ref,
                          b2_ref, o_ref, xpad_ref, ypad_ref, *, N, H):
    """Shapes (LCI = W*Cin_pad, LCO = W*Cout):
       x_ref   : (N, H, LCI)    bf16  lane-dense input (w-major, c-minor)
       w1_ref  : (3*LCI, LCO)   bf16  banded, dy-stacked layer-1 weights
       w2_ref  : (3*LCO, LCO)   bf16  banded, dy-stacked layer-2 weights
       s*_ref  : (1, LCO)       f32   folded BN scale (lane layout)
       b*_ref  : (1, LCO)       f32   folded BN shift (lane layout)
       o_ref   : (N*H, LCO)     f32   output
       xpad_ref: (N, H+2, LCI)  bf16  scratch, per-image H halo
       ypad_ref: (N, H+2, LCO)  bf16  scratch, per-image H halo
    """
    LCO = o_ref.shape[-1]

    def conv_bn_relu(pad_ref, data, w_ref, s_ref, b_ref):
        lc = pad_ref.shape[-1]
        zero_row = jnp.zeros((N, 1, lc), pad_ref.dtype)
        pad_ref[:, 0:1, :] = zero_row              # top halo row (per image)
        pad_ref[:, H + 1:H + 2, :] = zero_row      # bottom halo row
        pad_ref[:, 1:H + 1, :] = data              # interior (already bf16)

        xp = pad_ref[...]
        # Fold the 3 kernel-row taps into K: (N, H, 3*lc) -> (N*H, 3*lc).
        op = jnp.concatenate(
            [xp[:, 0:H, :], xp[:, 1:H + 1, :], xp[:, 2:H + 2, :]], axis=-1)
        op = op.reshape(N * H, 3 * lc)
        acc = jnp.dot(op, w_ref[...], preferred_element_type=jnp.float32)
        return jnp.maximum(acc * s_ref[...] + b_ref[...], 0.0)  # (N*H, LCO)

    # Layer 1 (Conv + BN + ReLU); activation stays in VMEM/vregs.
    y1 = conv_bn_relu(xpad_ref, x_ref[...], w1_ref, s1_ref, b1_ref)
    # Layer 2 (Conv + BN + ReLU).
    y2 = conv_bn_relu(ypad_ref,
                      y1.reshape(N, H, LCO).astype(ypad_ref.dtype),
                      w2_ref, s2_ref, b2_ref)
    o_ref[...] = y2.astype(o_ref.dtype)


def _decoder_pallas(x_flat, wband1, s1, b1, wband2, s2, b2, *, N, H):
    LCI = x_flat.shape[-1]
    LCO = wband2.shape[-1]
    M = N * H

    kernel = functools.partial(_decoder_fused_kernel, N=N, H=H)

    # Actual issued MXU flops (banded matrices include the W-padding zeros).
    flops = 2 * M * (3 * LCI) * LCO + 2 * M * (3 * LCO) * LCO
    bytes_accessed = (M * LCI * 2                  # x (bf16)
                      + 3 * LCI * LCO * 2          # wband1 (bf16)
                      + 3 * LCO * LCO * 2          # wband2 (bf16)
                      + 4 * LCO * 4                # BN scale / shift
                      + M * LCO * 4)               # out (f32)

    return pl.pallas_call(
        kernel,
        out_shape=jax.ShapeDtypeStruct((M, LCO), jnp.float32),
        grid=(1,),
        in_specs=[
            pl.BlockSpec((N, H, LCI), lambda i: (0, 0, 0)),
            pl.BlockSpec((3 * LCI, LCO), lambda i: (0, 0)),
            pl.BlockSpec((1, LCO), lambda i: (0, 0)),
            pl.BlockSpec((1, LCO), lambda i: (0, 0)),
            pl.BlockSpec((3 * LCO, LCO), lambda i: (0, 0)),
            pl.BlockSpec((1, LCO), lambda i: (0, 0)),
            pl.BlockSpec((1, LCO), lambda i: (0, 0)),
        ],
        out_specs=pl.BlockSpec((M, LCO), lambda i: (0, 0)),
        scratch_shapes=[
            pltpu.VMEM((N, H + 2, LCI), jnp.bfloat16),
            pltpu.VMEM((N, H + 2, LCO), jnp.bfloat16),
        ],
        compiler_params=pltpu.CompilerParams(
            dimension_semantics=("arbitrary",)),
        cost_estimate=pl.CostEstimate(
            flops=flops, transcendentals=0, bytes_accessed=bytes_accessed),
    )(x_flat, wband1, s1, b1, wband2, s2, b2)


# ----------------------------------------------------------------------------
# One-time parameter preparation (hoisted out of the forward pass).
# ----------------------------------------------------------------------------
def _build_band_weight(w_hwio, W):
    """(3,3,Cin,Cout) conv weight -> (3*W*Cin, W*Cout) banded, dy-stacked
    matrix.  W-direction zero padding is folded in (out-of-range taps absent);
    rows are laid out (dy, w_in, c_in), columns (w_out, c_out)."""
    kH, kW, Cin, Cout = w_hwio.shape
    wi = jnp.arange(W)[:, None]          # input column
    wo = jnp.arange(W)[None, :]          # output column
    dx = wi - wo + 1                     # kernel tap index
    mask = ((dx >= 0) & (dx < kW)).astype(w_hwio.dtype)
    dxc = jnp.clip(dx, 0, kW - 1)
    bands = []
    for dy in range(kH):
        blk = w_hwio[dy][dxc] * mask[:, :, None, None]       # (W, W, Cin, Cout)
        bands.append(
            jnp.transpose(blk, (0, 2, 1, 3)).reshape(W * Cin, W * Cout))
    return jnp.concatenate(bands, axis=0)                    # (3*W*Cin, W*Cout)


def _fold_bn(conv_bias, gamma, beta, running_mean, running_var, eps=1e-5):
    """Fold eval-mode BatchNorm (+ conv bias) into per-channel scale/shift."""
    inv_std = 1.0 / jnp.sqrt(running_var + eps)
    scale = gamma * inv_std
    shift = beta + (conv_bias - running_mean) * scale
    return scale, shift


def make_decoder_params(key, in_channels, out_channels, H, W):
    """Synthetic module parameters plus all kernel-side preprocessing
    (band matrices, BN fold, lane tiling, bf16 casts) done ONCE."""
    del H  # only W enters the banded-weight construction
    ks = jax.random.split(key, 4)

    def conv_block_params(kw, kb, cin, cout):
        w = 0.1 * jax.random.normal(kw, (3, 3, cin, cout), jnp.float32)  # HWIO
        b = 0.05 * jax.random.normal(kb, (cout,), jnp.float32)
        gamma = 1.0 + 0.1 * jnp.arange(cout, dtype=jnp.float32) / cout
        beta = 0.01 * jnp.arange(cout, dtype=jnp.float32)
        running_mean = 0.02 * jnp.arange(cout, dtype=jnp.float32)
        running_var = 1.0 + 0.05 * jnp.arange(cout, dtype=jnp.float32) / cout
        scale, shift = _fold_bn(b, gamma, beta, running_mean, running_var)
        return w, scale, shift

    w1, s1, b1 = conv_block_params(ks[0], ks[1], in_channels, out_channels)
    w2, s2, b2 = conv_block_params(ks[2], ks[3], out_channels, out_channels)

    # Pad input channels so the input lane width W*Cin is a multiple of 128
    # (full vregs).  For W=16, Cin=4 -> Cin_pad=8.
    cin_pad = in_channels
    for c in range(in_channels, in_channels + 128):
        if (W * c) % 128 == 0:
            cin_pad = c
            break

    w1_pad = jnp.pad(w1, ((0, 0), (0, 0), (0, cin_pad - in_channels), (0, 0)))
    wband1 = _build_band_weight(w1_pad, W).astype(jnp.bfloat16)
    wband2 = _build_band_weight(w2, W).astype(jnp.bfloat16)

    def tile_lane(v):                    # per-channel -> per-lane (w-major)
        return jnp.tile(v, W).reshape(1, W * out_channels)

    return dict(
        # raw module parameters (used by the f32 reference)
        w1=w1, s1=s1, b1=b1, w2=w2, s2=s2, b2=b2,
        # pre-processed kernel operands
        wband1=wband1, wband2=wband2,
        s1t=tile_lane(s1), b1t=tile_lane(b1),
        s2t=tile_lane(s2), b2t=tile_lane(b2))


# ----------------------------------------------------------------------------
# Forward (matches Decoder.forward with eval-mode BN).  NCHW in / NCHW out.
# The NCHW<->lane-dense transposes stay at the boundary only because the
# PyTorch interface is NCHW; an NHWC surrounding model would drop them.
# ----------------------------------------------------------------------------
@jax.jit
def decoder_forward(params, x_nchw):
    N, Cin, H, W = x_nchw.shape
    LCO = params["wband2"].shape[-1]
    Cout = LCO // W
    cin_pad = params["wband1"].shape[0] // (3 * W)

    x = jnp.transpose(x_nchw, (0, 2, 3, 1))                          # NHWC
    x = jnp.pad(x, ((0, 0), (0, 0), (0, 0), (0, cin_pad - Cin)))
    x_flat = x.reshape(N, H, W * cin_pad).astype(jnp.bfloat16)

    out_flat = _decoder_pallas(x_flat, params["wband1"], params["s1t"],
                               params["b1t"], params["wband2"],
                               params["s2t"], params["b2t"], N=N, H=H)
    out = out_flat.reshape(N, H, W, Cout)
    return jnp.transpose(out, (0, 3, 1, 2))                          # NCHW


def _reference_forward(params, x_nchw):
    """Pure-JAX f32 reference (lax.conv) for correctness checking."""
    x = jnp.transpose(x_nchw, (0, 2, 3, 1)).astype(jnp.float32)

    def block(x, w, s, b):
        y = lax.conv_general_dilated(
            x, w, window_strides=(1, 1), padding="SAME",
            dimension_numbers=("NHWC", "HWIO", "NHWC"))
        return jnp.maximum(y * s + b, 0.0)

    y = block(x, params["w1"], params["s1"], params["b1"])
    y = block(y, params["w2"], params["s2"], params["b2"])
    return jnp.transpose(y, (0, 3, 1, 2))


if __name__ == "__main__":
    in_channels, out_channels = 4, 8
    N, H, W = 2, 16, 16

    key = jax.random.PRNGKey(0)
    k_params, k_x = jax.random.split(key)
    params = make_decoder_params(k_params, in_channels, out_channels, H, W)
    x = jax.random.normal(k_x, (N, in_channels, H, W), jnp.float32)  # NCHW

    out = decoder_forward(params, x)
    out = jax.block_until_ready(out)

    ref = _reference_forward(params, x)
    assert out.shape == (N, out_channels, H, W)
    max_err = float(jnp.max(jnp.abs(out - ref)))
    # bf16 MXU operands -> loosened tolerance vs the f32 reference.
    assert max_err < 5e-2, f"mismatch vs reference: max abs err {max_err}"

    print("KERNEL_OK")
</pallas_src>

<mosaic_0001>
module attributes {stable_mosaic.version = 11 : i64} {
  func.func @_decoder_fused_kernel(%arg0: i32, %arg1: memref<2x16x128xbf16, #tpu.memory_space<vmem>>, %arg2: memref<384x128xbf16, #tpu.memory_space<vmem>>, %arg3: memref<1x128xf32, #tpu.memory_space<vmem>>, %arg4: memref<1x128xf32, #tpu.memory_space<vmem>>, %arg5: memref<384x128xbf16, #tpu.memory_space<vmem>>, %arg6: memref<1x128xf32, #tpu.memory_space<vmem>>, %arg7: memref<1x128xf32, #tpu.memory_space<vmem>>, %arg8: memref<32x128xf32, #tpu.memory_space<vmem>>, %arg9: memref<2x18x128xbf16, #tpu.memory_space<vmem>>, %arg10: memref<2x18x128xbf16, #tpu.memory_space<vmem>>) attributes {dimension_semantics = [#tpu.dimension_semantics<arbitrary>], iteration_bounds = array<i64: 1>, scalar_prefetch = 0 : i64, scratch_operands = 2 : i64, tpu.core_type = #tpu.core_type<tc>, window_params = [{pipeline_mode = #tpu.pipeline_mode<synchronous>, transform_indices = @transform_0, window_bounds = array<i64: 2, 16, 128>}, {pipeline_mode = #tpu.pipeline_mode<synchronous>, transform_indices = @transform_1, window_bounds = array<i64: 384, 128>}, {pipeline_mode = #tpu.pipeline_mode<synchronous>, transform_indices = @transform_2, window_bounds = array<i64: 1, 128>}, {pipeline_mode = #tpu.pipeline_mode<synchronous>, transform_indices = @transform_3, window_bounds = array<i64: 1, 128>}, {pipeline_mode = #tpu.pipeline_mode<synchronous>, transform_indices = @transform_4, window_bounds = array<i64: 384, 128>}, {pipeline_mode = #tpu.pipeline_mode<synchronous>, transform_indices = @transform_5, window_bounds = array<i64: 1, 128>}, {pipeline_mode = #tpu.pipeline_mode<synchronous>, transform_indices = @transform_6, window_bounds = array<i64: 1, 128>}, {pipeline_mode = #tpu.pipeline_mode<synchronous>, transform_indices = @transform_7, window_bounds = array<i64: 32, 128>}]} {
    %c0 = arith.constant 0 : index
    %c0_0 = arith.constant 0 : index
    %c0_1 = arith.constant 0 : index
    %0 = vector.load %arg1[%c0, %c0_0, %c0_1] : memref<2x16x128xbf16, #tpu.memory_space<vmem>>, vector<2x16x128xbf16>
    %cst = arith.constant 0.000000e+00 : bf16
    %1 = vector.broadcast %cst : bf16 to vector<2x1x128xbf16>
    %c0_2 = arith.constant 0 : index
    %c0_3 = arith.constant 0 : index
    %c0_4 = arith.constant 0 : index
    %2 = vector.load %arg9[%c0_2, %c0_3, %c0_4] : memref<2x18x128xbf16, #tpu.memory_space<vmem>>, vector<2x1x128xbf16>
    tpu.vector_store %arg9[%c0_2, %c0_3, %c0_4], %1 {strides = array<i32>} : memref<2x18x128xbf16, #tpu.memory_space<vmem>>, vector<2x1x128xbf16>,
    %c0_5 = arith.constant 0 : index
    %c17 = arith.constant 17 : index
    %c0_6 = arith.constant 0 : index
    %3 = vector.load %arg9[%c0_5, %c17, %c0_6] : memref<2x18x128xbf16, #tpu.memory_space<vmem>>, vector<2x1x128xbf16>
    tpu.vector_store %arg9[%c0_5, %c17, %c0_6], %1 {strides = array<i32>} : memref<2x18x128xbf16, #tpu.memory_space<vmem>>, vector<2x1x128xbf16>,
    %c0_7 = arith.constant 0 : index
    %c1 = arith.constant 1 : index
    %c0_8 = arith.constant 0 : index
    %4 = vector.load %arg9[%c0_7, %c1, %c0_8] : memref<2x18x128xbf16, #tpu.memory_space<vmem>>, vector<2x16x128xbf16>
    tpu.vector_store %arg9[%c0_7, %c1, %c0_8], %0 {strides = array<i32>} : memref<2x18x128xbf16, #tpu.memory_space<vmem>>, vector<2x16x128xbf16>,
    %c0_9 = arith.constant 0 : index
    %c0_10 = arith.constant 0 : index
    %c0_11 = arith.constant 0 : index
    %5 = vector.load %arg9[%c0_9, %c0_10, %c0_11] : memref<2x18x128xbf16, #tpu.memory_space<vmem>>, vector<2x18x128xbf16>
    %6 = vector.extract_strided_slice %5 {offsets = [0, 0, 0], sizes = [2, 16, 128], strides = [1, 1, 1]} : vector<2x18x128xbf16> to vector<2x16x128xbf16>
    %7 = vector.extract_strided_slice %5 {offsets = [0, 1, 0], sizes = [2, 16, 128], strides = [1, 1, 1]} : vector<2x18x128xbf16> to vector<2x16x128xbf16>
    %8 = vector.extract_strided_slice %5 {offsets = [0, 2, 0], sizes = [2, 16, 128], strides = [1, 1, 1]} : vector<2x18x128xbf16> to vector<2x16x128xbf16>
    %9 = tpu.concatenate %6, %7, %8 in 2 : vector<2x16x128xbf16>, vector<2x16x128xbf16>, vector<2x16x128xbf16> -> vector<2x16x384xbf16>
    %10 = vector.shape_cast %9 : vector<2x16x384xbf16> to vector<32x384xbf16>
    %c0_12 = arith.constant 0 : index
    %c0_13 = arith.constant 0 : index
    %11 = vector.load %arg2[%c0_12, %c0_13] : memref<384x128xbf16, #tpu.memory_space<vmem>>, vector<384x128xbf16>
    %cst_14 = arith.constant dense<0.000000e+00> : vector<32x128xf32>
    %12 = tpu.matmul %10, %11, %cst_14 {dimension_numbers = #tpu.dot_dimension_numbers<[1], [0], [0], [1], [0, 0, 1, 1], [], []>} : vector<32x384xbf16>, vector<384x128xbf16>, vector<32x128xf32> -> vector<32x128xf32>
    %c0_15 = arith.constant 0 : index
    %c0_16 = arith.constant 0 : index
    %13 = vector.load %arg3[%c0_15, %c0_16] : memref<1x128xf32, #tpu.memory_space<vmem>>, vector<1x128xf32>
    %14 = vector.broadcast %13 : vector<1x128xf32> to vector<32x128xf32>
    %15 = arith.mulf %12, %14 : vector<32x128xf32>
    %c0_17 = arith.constant 0 : index
    %c0_18 = arith.constant 0 : index
    %16 = vector.load %arg4[%c0_17, %c0_18] : memref<1x128xf32, #tpu.memory_space<vmem>>, vector<1x128xf32>
    %17 = vector.broadcast %16 : vector<1x128xf32> to vector<32x128xf32>
    %18 = arith.addf %15, %17 : vector<32x128xf32>
    %cst_19 = arith.constant 0.000000e+00 : f32
    %19 = vector.broadcast %cst_19 : f32 to vector<32x128xf32>
    %20 = arith.maximumf %18, %19 : vector<32x128xf32>
    %21 = vector.shape_cast %20 : vector<32x128xf32> to vector<2x16x128xf32>
    %22 = arith.truncf %21 : vector<2x16x128xf32> to vector<2x16x128xbf16>
    %cst_20 = arith.constant 0.000000e+00 : bf16
    %23 = vector.broadcast %cst_20 : bf16 to vector<2x1x128xbf16>
    %c0_21 = arith.constant 0 : index
    %c0_22 = arith.constant 0 : index
    %c0_23 = arith.constant 0 : index
    %24 = vector.load %arg10[%c0_21, %c0_22, %c0_23] : memref<2x18x128xbf16, #tpu.memory_space<vmem>>, vector<2x1x128xbf16>
    tpu.vector_store %arg10[%c0_21, %c0_22, %c0_23], %23 {strides = array<i32>} : memref<2x18x128xbf16, #tpu.memory_space<vmem>>, vector<2x1x128xbf16>,
    %c0_24 = arith.constant 0 : index
    %c17_25 = arith.constant 17 : index
    %c0_26 = arith.constant 0 : index
    %25 = vector.load %arg10[%c0_24, %c17_25, %c0_26] : memref<2x18x128xbf16, #tpu.memory_space<vmem>>, vector<2x1x128xbf16>
    tpu.vector_store %arg10[%c0_24, %c17_25, %c0_26], %23 {strides = array<i32>} : memref<2x18x128xbf16, #tpu.memory_space<vmem>>, vector<2x1x128xbf16>,
    %c0_27 = arith.constant 0 : index
    %c1_28 = arith.constant 1 : index
    %c0_29 = arith.constant 0 : index
    %26 = vector.load %arg10[%c0_27, %c1_28, %c0_29] : memref<2x18x128xbf16, #tpu.memory_space<vmem>>, vector<2x16x128xbf16>
    tpu.vector_store %arg10[%c0_27, %c1_28, %c0_29], %22 {strides = array<i32>} : memref<2x18x128xbf16, #tpu.memory_space<vmem>>, vector<2x16x128xbf16>,
    %c0_30 = arith.constant 0 : index
    %c0_31 = arith.constant 0 : index
    %c0_32 = arith.constant 0 : index
    %27 = vector.load %arg10[%c0_30, %c0_31, %c0_32] : memref<2x18x128xbf16, #tpu.memory_space<vmem>>, vector<2x18x128xbf16>
    %28 = vector.extract_strided_slice %27 {offsets = [0, 0, 0], sizes = [2, 16, 128], strides = [1, 1, 1]} : vector<2x18x128xbf16> to vector<2x16x128xbf16>
    %29 = vector.extract_strided_slice %27 {offsets = [0, 1, 0], sizes = [2, 16, 128], strides = [1, 1, 1]} : vector<2x18x128xbf16> to vector<2x16x128xbf16>
    %30 = vector.extract_strided_slice %27 {offsets = [0, 2, 0], sizes = [2, 16, 128], strides = [1, 1, 1]} : vector<2x18x128xbf16> to vector<2x16x128xbf16>
    %31 = tpu.concatenate %28, %29, %30 in 2 : vector<2x16x128xbf16>, vector<2x16x128xbf16>, vector<2x16x128xbf16> -> vector<2x16x384xbf16>
    %32 = vector.shape_cast %31 : vector<2x16x384xbf16> to vector<32x384xbf16>
    %c0_33 = arith.constant 0 : index
    %c0_34 = arith.constant 0 : index
    %33 = vector.load %arg5[%c0_33, %c0_34] : memref<384x128xbf16, #tpu.memory_space<vmem>>, vector<384x128xbf16>
    %cst_35 = arith.constant dense<0.000000e+00> : vector<32x128xf32>
    %34 = tpu.matmul %32, %33, %cst_35 {dimension_numbers = #tpu.dot_dimension_numbers<[1], [0], [0], [1], [0, 0, 1, 1], [], []>} : vector<32x384xbf16>, vector<384x128xbf16>, vector<32x128xf32> -> vector<32x128xf32>
    %c0_36 = arith.constant 0 : index
    %c0_37 = arith.constant 0 : index
    %35 = vector.load %arg6[%c0_36, %c0_37] : memref<1x128xf32, #tpu.memory_space<vmem>>, vector<1x128xf32>
    %36 = vector.broadcast %35 : vector<1x128xf32> to vector<32x128xf32>
    %37 = arith.mulf %34, %36 : vector<32x128xf32>
    %c0_38 = arith.constant 0 : index
    %c0_39 = arith.constant 0 : index
    %38 = vector.load %arg7[%c0_38, %c0_39] : memref<1x128xf32, #tpu.memory_space<vmem>>, vector<1x128xf32>
    %39 = vector.broadcast %38 : vector<1x128xf32> to vector<32x128xf32>
    %40 = arith.addf %37, %39 : vector<32x128xf32>
    %cst_40 = arith.constant 0.000000e+00 : f32
    %41 = vector.broadcast %cst_40 : f32 to vector<32x128xf32>
    %42 = arith.maximumf %40, %41 : vector<32x128xf32>
    %c0_41 = arith.constant 0 : index
    %c0_42 = arith.constant 0 : index
    %43 = vector.load %arg8[%c0_41, %c0_42] : memref<32x128xf32, #tpu.memory_space<vmem>>, vector<32x128xf32>
    tpu.vector_store %arg8[%c0_41, %c0_42], %42 {strides = array<i32>} : memref<32x128xf32, #tpu.memory_space<vmem>>, vector<32x128xf32>,
    return
  }
  func.func @transform_0(%arg0: i32) -> (i32, i32, i32) {
    %c0_i32 = arith.constant 0 : i32
    %c0_i32_0 = arith.constant 0 : i32
    %c0_i32_1 = arith.constant 0 : i32
    %c0_i32_2 = arith.constant 0 : i32
    return %c0_i32, %c0_i32_0, %c0_i32_1 : i32, i32, i32
  }
  func.func @transform_1(%arg0: i32) -> (i32, i32) {
    %c0_i32 = arith.constant 0 : i32
    %c0_i32_0 = arith.constant 0 : i32
    %c0_i32_1 = arith.constant 0 : i32
    return %c0_i32, %c0_i32_0 : i32, i32
  }
  func.func @transform_2(%arg0: i32) -> (i32, i32) {
    %c0_i32 = arith.constant 0 : i32
    %c0_i32_0 = arith.constant 0 : i32
    %c0_i32_1 = arith.constant 0 : i32
    return %c0_i32, %c0_i32_0 : i32, i32
  }
  func.func @transform_3(%arg0: i32) -> (i32, i32) {
    %c0_i32 = arith.constant 0 : i32
    %c0_i32_0 = arith.constant 0 : i32
    %c0_i32_1 = arith.constant 0 : i32
    return %c0_i32, %c0_i32_0 : i32, i32
  }
  func.func @transform_4(%arg0: i32) -> (i32, i32) {
    %c0_i32 = arith.constant 0 : i32
    %c0_i32_0 = arith.constant 0 : i32
    %c0_i32_1 = arith.constant 0 : i32
    return %c0_i32, %c0_i32_0 : i32, i32
  }
  func.func @transform_5(%arg0: i32) -> (i32, i32) {
    %c0_i32 = arith.constant 0 : i32
    %c0_i32_0 = arith.constant 0 : i32
    %c0_i32_1 = arith.constant 0 : i32
    return %c0_i32, %c0_i32_0 : i32, i32
  }
  func.func @transform_6(%arg0: i32) -> (i32, i32) {
    %c0_i32 = arith.constant 0 : i32
    %c0_i32_0 = arith.constant 0 : i32
    %c0_i32_1 = arith.constant 0 : i32
    return %c0_i32, %c0_i32_0 : i32, i32
  }
  func.func @transform_7(%arg0: i32) -> (i32, i32) {
    %c0_i32 = arith.constant 0 : i32
    %c0_i32_0 = arith.constant 0 : i32
    %c0_i32_1 = arith.constant 0 : i32
    return %c0_i32, %c0_i32_0 : i32, i32
  }
}

</mosaic_0001>

<llo_original>
// kernel: decoder_forward.1
$region0: #{decoder_forward.1}
  #allocation0 [shape = 'u32[]', space=smem, size = 0x4, offset = 0x4, fixed_abs, tag = 'smem constant byte address 0x4 - core index']
  #allocation1 [shape = 'u32[144,128]{1,0:T(1,128)}', space=vmem, size = 0x12000, scoped, tag = 'internal scratch']
  #allocation2 [shape = 'bf16[2,18,128]{2,1,0:T(8,128)(2,1)}', space=vmem, size = 0x3000, scoped, tag = 'scratch operand']
  #allocation3 [shape = 'bf16[2,18,128]{2,1,0:T(8,128)(2,1)}', space=vmem, size = 0x3000, scoped, tag = 'scratch operand']
  %s0 = inlined_call_operand.vmem [shape: bf16[2,16,128], index: 0, kind: input, shape index: {}]
  %s1 = inlined_call_operand.vmem [shape: bf16[384,128], index: 1, kind: input, shape index: {}]
  %s2 = inlined_call_operand.vmem [shape: f32[1,128], index: 2, kind: input, shape index: {}]
  %s3 = inlined_call_operand.vmem [shape: f32[1,128], index: 3, kind: input, shape index: {}]
  %s4 = inlined_call_operand.vmem [shape: bf16[384,128], index: 4, kind: input, shape index: {}]
  %s5 = inlined_call_operand.vmem [shape: f32[1,128], index: 5, kind: input, shape index: {}]
  %s6 = inlined_call_operand.vmem [shape: f32[1,128], index: 6, kind: input, shape index: {}]
  %s7 = inlined_call_operand.vmem [shape: f32[32,128], index: 7, kind: output, shape index: {}]
  %s8 = sld [smem:[#allocation0]]
  $region38: #{decoder_forward.1} parent=0
    _
  %s10 = ssub.s32 1, %s8
  %s11 = scalar_select 0, %s10, %s8
  // Predicated region
  $region2: #{decoder_forward.1} parent=0 // pred_check
    _
  $region3: #{decoder_forward.1} parent=0 // pred_check_branch
    %13 = sbr.rel (0) target = $region5
  $region4: #{decoder_forward.1} parent=0 // pred_region
    _
  $region5: #{decoder_forward.1} parent=0 // pred_fallthru
    _
  // Predicated region
  $region6: #{decoder_forward.1} parent=0 // pred_check
    _
  $region7: #{decoder_forward.1} parent=0 // pred_check_branch
    %15 = sbr.rel (0) target = $region9
  $region8: #{decoder_forward.1} parent=0 // pred_region
    _
  $region9: #{decoder_forward.1} parent=0 // pred_fallthru
    _
  // Predicated region
  $region10: #{decoder_forward.1} parent=0 // pred_check
    _
  $region11: #{decoder_forward.1} parent=0 // pred_check_branch
    %17 = sbr.rel (0) target = $region13
  $region12: #{decoder_forward.1} parent=0 // pred_region
    _
  $region13: #{decoder_forward.1} parent=0 // pred_fallthru
    _
  // Predicated region
  $region14: #{decoder_forward.1} parent=0 // pred_check
    _
  $region15: #{decoder_forward.1} parent=0 // pred_check_branch
    %19 = sbr.rel (0) target = $region17
  $region16: #{decoder_forward.1} parent=0 // pred_region
    _
  $region17: #{decoder_forward.1} parent=0 // pred_fallthru
    _
  // Predicated region
  $region18: #{decoder_forward.1} parent=0 // pred_check
    _
  $region19: #{decoder_forward.1} parent=0 // pred_check_branch
    %21 = sbr.rel (0) target = $region21
  $region20: #{decoder_forward.1} parent=0 // pred_region
    _
  $region21: #{decoder_forward.1} parent=0 // pred_fallthru
    _
  // Predicated region
  $region22: #{decoder_forward.1} parent=0 // pred_check
    _
  $region23: #{decoder_forward.1} parent=0 // pred_check_branch
    %23 = sbr.rel (0) target = $region25
  $region24: #{decoder_forward.1} parent=0 // pred_region
    _
  $region25: #{decoder_forward.1} parent=0 // pred_fallthru
    _
  // Predicated region
  $region26: #{decoder_forward.1} parent=0 // pred_check
    _
  $region27: #{decoder_forward.1} parent=0 // pred_check_branch
    %25 = sbr.rel (0) target = $region29
  $region28: #{decoder_forward.1} parent=0 // pred_region
    _
  $region29: #{decoder_forward.1} parent=0 // pred_fallthru
    _
  %v27 = vld [vmem:[%s0] sm:$0xf]
  %v28 = vld [vmem:[%s0 + $0x4] sm:$0xf]
  %v29 = vld [vmem:[%s0 + $0x8] sm:$0xf]
  %v30 = vld [vmem:[%s0 + $0xc] sm:$0xf]
  %vm31 = vcmask 1040384
  %vm32 = vsmask.f32 256
  %vm33 = vmand %vm31, %vm32
  %v34 = vld [vmem:[#allocation2] sm:$0x1]
  %v35 = vsel %vm33, 0, %v34
  %36 = vst [vmem:[#allocation2] sm:$0x1] %v35
  %v37 = vld [vmem:[#allocation2 + $0xc] sm:$0x1]
  %v38 = vsel %vm33, 0, %v37
  %39 = vst [vmem:[#allocation2 + $0xc] sm:$0x1] %v38
  %vm40 = vsmask.f32 7938
  %vm41 = vmand %vm31, %vm40
  %v42 = vld [vmem:[#allocation2 + $0x8] sm:$0x1]
  %v43 = vsel %vm41, 0, %v42
  %44 = vst [vmem:[#allocation2 + $0x8] sm:$0x1] %v43
  %v45 = vld [vmem:[#allocation2 + $0x14] sm:$0x1]
  %v46 = vsel %vm41, 0, %v45
  %47 = vst [vmem:[#allocation2 + $0x14] sm:$0x1] %v46
  %vm48 = vsmask.f32 4368
  %vm49 = vmor %vm32, %vm48
  %v51 = vshrl.u32 %v27, 16
  %v53 = vrot.slane %v51, 7
  %v54 = vshll.u32 %v27, 16
  %v56 = vor.u32 %v53, %v54
  %v57 = vrot.slane %v53, 4
  %v59 = vshrl.u32 %v28, 16
  %v61 = vrot.slane %v59, 7
  %v62 = vshll.u32 %v28, 16
  %v64 = vor.u32 %v61, %v62
  %v65 = vsel %vm49, %v57, %v64
  %v66 = vrot.slane %v61, 4
  %v68 = vshrl.u32 %v29, 16
  %v70 = vrot.slane %v68, 7
  %v71 = vshll.u32 %v29, 16
  %v73 = vor.u32 %v70, %v71
  %v74 = vrot.slane %v70, 4
  %v76 = vshrl.u32 %v30, 16
  %v78 = vrot.slane %v76, 7
  %v79 = vshll.u32 %v30, 16
  %v81 = vor.u32 %v78, %v79
  %v82 = vsel %vm49, %v74, %v81
  %v83 = vrot.slane %v78, 4
  %vm90 = vcmask 1043456
  %vm91 = vmand %vm90, %vm40
  %v92 = vld [vmem:[#allocation2] sm:$0xf]
  %v93 = vsel %vm91, %v56, %v92
  %94 = vst [vmem:[#allocation2] sm:$0xf] %v93
  %95 = vst [vmem:[#allocation2 + $0x4] sm:$0xf] %v65
  %v96 = vld [vmem:[#allocation2 + $0x8] sm:$0x1]
  %v97 = vsel %vm33, %v66, %v96
  %98 = vst [vmem:[#allocation2 + $0x8] sm:$0x1] %v97
  %v99 = vld [vmem:[#allocation2 + $0xc] sm:$0xf]
  %v100 = vsel %vm91, %v73, %v99
  %101 = vst [vmem:[#allocation2 + $0xc] sm:$0xf] %v100
  %102 = vst [vmem:[#allocation2 + $0x10] sm:$0xf] %v82
  %v103 = vld [vmem:[#allocation2 + $0x14] sm:$0x1]
  %v104 = vsel %vm33, %v83, %v103
  %105 = vst [vmem:[#allocation2 + $0x14] sm:$0x1] %v104
  %v106 = vld [vmem:[#allocation2] sm:$0xf]
  %v107 = vld [vmem:[#allocation2 + $0x4] sm:$0xf]
  %v108 = vld [vmem:[#allocation2 + $0x8] sm:$0x1]
  %v109 = vld [vmem:[#allocation2 + $0xc] sm:$0xf]
  %v110 = vld [vmem:[#allocation2 + $0x10] sm:$0xf]
  %v111 = vld [vmem:[#allocation2 + $0x14] sm:$0x1]
  %v116 = vunpack.c.l.b16 %v106
  %v117 = vunpack.c.l.b16 %v107
  %v118 = vunpack.c.l.b16 %v109
  %v119 = vunpack.c.l.b16 %v110
  %v120 = vpack.c.b16 %v117, %v116
  %v121 = vpack.c.b16 %v119, %v118
  %v126 = vunpack.c.l.b16 %v108
  %v127 = vunpack.c.l.b16 %v111
  %v128 = vpack.c.b16 %v126, %v126
  %v129 = vpack.c.b16 %v127, %v127
  %vm130 = vsmask.f32 7424
  %v132 = vshrl.u32 %v120, 16
  %v134 = vshll.u32 %v120, 16
  %v136 = vrot.slane %v134, 1
  %v137 = vor.u32 %v132, %v136
  %v139 = vshll.u32 %v128, 16
  %v141 = vrot.slane %v139, 1
  %v142 = vsel %vm130, %v137, %v141
  %v144 = vshrl.u32 %v121, 16
  %v146 = vshll.u32 %v121, 16
  %v148 = vrot.slane %v146, 1
  %v149 = vor.u32 %v144, %v148
  %v151 = vshll.u32 %v129, 16
  %v153 = vrot.slane %v151, 1
  %v154 = vsel %vm130, %v149, %v153
  %vm157 = vcmask 1046528
  %v158 = vrot.slane %v120, 1
  %v159 = vrot.slane %v128, 1
  %v160 = vsel %vm157, %v158, %v159
  %v161 = vrot.slane %v121, 1
  %v162 = vrot.slane %v129, 1
  %v163 = vsel %vm157, %v161, %v162
  %v166 = vld [vmem:[%s1] sm:$0xf]
  %v167 = vld [vmem:[%s1 + $0x4] sm:$0xf]
  %v168 = vld [vmem:[%s1 + $0x8] sm:$0xf]
  %v169 = vld [vmem:[%s1 + $0xc] sm:$0xf]
  %v170 = vld [vmem:[%s1 + $0x10] sm:$0xf]
  %v171 = vld [vmem:[%s1 + $0x14] sm:$0xf]
  %v172 = vld [vmem:[%s1 + $0x18] sm:$0xf]
  %v173 = vld [vmem:[%s1 + $0x1c] sm:$0xf]
  %v174 = vld [vmem:[%s1 + $0x20] sm:$0xf]
  %v175 = vld [vmem:[%s1 + $0x24] sm:$0xf]
  %v176 = vld [vmem:[%s1 + $0x28] sm:$0xf]
  %v177 = vld [vmem:[%s1 + $0x2c] sm:$0xf]
  %v178 = vld [vmem:[%s1 + $0x30] sm:$0xf]
  %v179 = vld [vmem:[%s1 + $0x34] sm:$0xf]
  %v180 = vld [vmem:[%s1 + $0x38] sm:$0xf]
  %v181 = vld [vmem:[%s1 + $0x3c] sm:$0xf]
  %v182 = vld [vmem:[%s1 + $0x40] sm:$0xf]
  %v183 = vld [vmem:[%s1 + $0x44] sm:$0xf]
  %v184 = vld [vmem:[%s1 + $0x48] sm:$0xf]
  %v185 = vld [vmem:[%s1 + $0x4c] sm:$0xf]
  %v186 = vld [vmem:[%s1 + $0x50] sm:$0xf]
  %v187 = vld [vmem:[%s1 + $0x54] sm:$0xf]
  %v188 = vld [vmem:[%s1 + $0x58] sm:$0xf]
  %v189 = vld [vmem:[%s1 + $0x5c] sm:$0xf]
  %v190 = vld [vmem:[%s1 + $0x60] sm:$0xf]
  %v191 = vld [vmem:[%s1 + $0x64] sm:$0xf]
  %v192 = vld [vmem:[%s1 + $0x68] sm:$0xf]
  %v193 = vld [vmem:[%s1 + $0x6c] sm:$0xf]
  %v194 = vld [vmem:[%s1 + $0x70] sm:$0xf]
  %v195 = vld [vmem:[%s1 + $0x74] sm:$0xf]
  %v196 = vld [vmem:[%s1 + $0x78] sm:$0xf]
  %v197 = vld [vmem:[%s1 + $0x7c] sm:$0xf]
  %v198 = vld [vmem:[%s1 + $0x80] sm:$0xf]
  %v199 = vld [vmem:[%s1 + $0x84] sm:$0xf]
  %v200 = vld [vmem:[%s1 + $0x88] sm:$0xf]
  %v201 = vld [vmem:[%s1 + $0x8c] sm:$0xf]
  %v202 = vld [vmem:[%s1 + $0x90] sm:$0xf]
  %v203 = vld [vmem:[%s1 + $0x94] sm:$0xf]
  %v204 = vld [vmem:[%s1 + $0x98] sm:$0xf]
  %v205 = vld [vmem:[%s1 + $0x9c] sm:$0xf]
  %v206 = vld [vmem:[%s1 + $0xa0] sm:$0xf]
  %v207 = vld [vmem:[%s1 + $0xa4] sm:$0xf]
  %v208 = vld [vmem:[%s1 + $0xa8] sm:$0xf]
  %v209 = vld [vmem:[%s1 + $0xac] sm:$0xf]
  %v210 = vld [vmem:[%s1 + $0xb0] sm:$0xf]
  %v211 = vld [vmem:[%s1 + $0xb4] sm:$0xf]
  %v212 = vld [vmem:[%s1 + $0xb8] sm:$0xf]
  %v213 = vld [vmem:[%s1 + $0xbc] sm:$0xf]
  %v262 = vunpack.c.l.b16 %v166
  %v263 = vunpack.c.l.b16 %v167
  %v264 = vunpack.c.l.b16 %v168
  %v265 = vunpack.c.l.b16 %v169
  %v266 = vunpack.c.l.b16 %v170
  %v267 = vunpack.c.l.b16 %v171
  %v268 = vunpack.c.l.b16 %v172
  %v269 = vunpack.c.l.b16 %v173
  %v270 = vunpack.c.l.b16 %v174
  %v271 = vunpack.c.l.b16 %v175
  %v272 = vunpack.c.l.b16 %v176
  %v273 = vunpack.c.l.b16 %v177
  %v274 = vunpack.c.l.b16 %v178
  %v275 = vunpack.c.l.b16 %v179
  %v276 = vunpack.c.l.b16 %v180
  %v277 = vunpack.c.l.b16 %v181
  %v278 = vunpack.c.l.b16 %v182
  %v279 = vunpack.c.l.b16 %v183
  %v280 = vunpack.c.l.b16 %v184
  %v281 = vunpack.c.l.b16 %v185
  %v282 = vunpack.c.l.b16 %v186
  %v283 = vunpack.c.l.b16 %v187
  %v284 = vunpack.c.l.b16 %v188
  %v285 = vunpack.c.l.b16 %v189
  %v286 = vunpack.c.l.b16 %v190
  %v287 = vunpack.c.l.b16 %v191
  %v288 = vunpack.c.l.b16 %v192
  %v289 = vunpack.c.l.b16 %v193
  %v290 = vunpack.c.l.b16 %v194
  %v291 = vunpack.c.l.b16 %v195
  %v292 = vunpack.c.l.b16 %v196
  %v293 = vunpack.c.l.b16 %v197
  %v294 = vunpack.c.l.b16 %v198
  %v295 = vunpack.c.l.b16 %v199
  %v296 = vunpack.c.l.b16 %v200
  %v297 = vunpack.c.l.b16 %v201
  %v298 = vunpack.c.l.b16 %v202
  %v299 = vunpack.c.l.b16 %v203
  %v300 = vunpack.c.l.b16 %v204
  %v301 = vunpack.c.l.b16 %v205
  %v302 = vunpack.c.l.b16 %v206
  %v303 = vunpack.c.l.b16 %v207
  %v304 = vunpack.c.l.b16 %v208
  %v305 = vunpack.c.l.b16 %v209
  %v306 = vunpack.c.l.b16 %v210
  %v307 = vunpack.c.l.b16 %v211
  %v308 = vunpack.c.l.b16 %v212
  %v309 = vunpack.c.l.b16 %v213
  %v310 = vpack.c.b16 %v263, %v262
  %v311 = vpack.c.b16 %v265, %v264
  %v312 = vpack.c.b16 %v267, %v266
  %v313 = vpack.c.b16 %v269, %v268
  %v314 = vpack.c.b16 %v271, %v270
  %v315 = vpack.c.b16 %v273, %v272
  %v316 = vpack.c.b16 %v275, %v274
  %v317 = vpack.c.b16 %v277, %v276
  %v318 = vpack.c.b16 %v279, %v278
  %v319 = vpack.c.b16 %v281, %v280
  %v320 = vpack.c.b16 %v283, %v282
  %v321 = vpack.c.b16 %v285, %v284
  %v322 = vpack.c.b16 %v287, %v286
  %v323 = vpack.c.b16 %v289, %v288
  %v324 = vpack.c.b16 %v291, %v290
  %v325 = vpack.c.b16 %v293, %v292
  %v326 = vpack.c.b16 %v295, %v294
  %v327 = vpack.c.b16 %v297, %v296
  %v328 = vpack.c.b16 %v299, %v298
  %v329 = vpack.c.b16 %v301, %v300
  %v330 = vpack.c.b16 %v303, %v302
  %v331 = vpack.c.b16 %v305, %v304
  %v332 = vpack.c.b16 %v307, %v306
  %v333 = vpack.c.b16 %v309, %v308
  %358 = vmatprep.subr.bf16.mxu0 0
  %359 = vmatpush1.bf16.msra.mxu0 %v317
  %360 = vmatprep.subr.bf16.mxu0 0
  %361 = vmatpush1.bf16.msra.mxu0 %v316
  %362 = vmatprep.subr.bf16.mxu0 0
  %363 = vmatpush1.bf16.msra.mxu0 %v315
  %364 = vmatprep.subr.bf16.mxu0 0
  %365 = vmatpush1.bf16.msra.mxu0 %v314
  %366 = vmatprep.subr.bf16.mxu0 0
  %367 = vmatpush1.bf16.msra.mxu0 %v313
  %368 = vmatprep.subr.bf16.mxu0 0
  %369 = vmatpush1.bf16.msra.mxu0 %v312
  %370 = vmatprep.subr.bf16.mxu0 0
  %371 = vmatpush1.bf16.msra.mxu0 %v311
  %372 = vmatprep.subr.bf16.mxu0 0
  %373 = vmatpush1.bf16.msra.mxu0 %v310
  %374 = vmatprep.subr.bf16.mxu0 0
  %375 = vmatpush2.bf16.msra.mxu0 %v325
  %376 = vmatprep.subr.bf16.mxu0 0
  %377 = vmatpush2.bf16.msra.mxu0 %v324
  %378 = vmatprep.subr.bf16.mxu0 0
  %379 = vmatpush2.bf16.msra.mxu0 %v323
  %380 = vmatprep.subr.bf16.mxu0 0
  %381 = vmatpush2.bf16.msra.mxu0 %v322
  %382 = vmatprep.subr.bf16.mxu0 0
  %383 = vmatpush2.bf16.msra.mxu0 %v321
  %384 = vmatprep.subr.bf16.mxu0 0
  %385 = vmatpush2.bf16.msra.mxu0 %v320
  %386 = vmatprep.subr.bf16.mxu0 0
  %387 = vmatpush2.bf16.msra.mxu0 %v319
  %388 = vmatprep.subr.bf16.mxu0 0
  %389 = vmatpush2.bf16.msra.mxu0 %v318
  %390 = vmatprep.mubr.bf16.mxu0 %v142
  %391 = vmatmul.mubr.bf16.gmra.mxu0 %v120
  %v392 = vpop.f32.mrf.mxu0
  %v393 = vadd.f32 0.0, %v392
  %v394 = vpop.f32.mrf.mxu0
  %v395 = vpop.f32.mrf.mxu0
  %v396 = vadd.f32 0.0, %v395
  %v397 = vpop.f32.mrf.mxu0
  %398 = vmatprep.mubr.bf16.mxu0 %v154
  %399 = vmatmul.mubr.bf16.gmra.mxu0 %v121
  %v400 = vpop.f32.mrf.mxu0
  %v401 = vadd.f32 0.0, %v400
  %v402 = vpop.f32.mrf.mxu0
  %v403 = vpop.f32.mrf.mxu0
  %v404 = vadd.f32 0.0, %v403
  %v405 = vpop.f32.mrf.mxu0
  %406 = vdwg.mxu0
  %407 = vmatprep.subr.bf16.mxu0 0
  %408 = vmatpush1.bf16.msra.mxu0 %v333
  %409 = vmatprep.subr.bf16.mxu0 0
  %410 = vmatpush1.bf16.msra.mxu0 %v332
  %411 = vmatprep.subr.bf16.mxu0 0
  %412 = vmatpush1.bf16.msra.mxu0 %v331
  %413 = vmatprep.subr.bf16.mxu0 0
  %414 = vmatpush1.bf16.msra.mxu0 %v330
  %415 = vmatprep.subr.bf16.mxu0 0
  %416 = vmatpush1.bf16.msra.mxu0 %v329
  %417 = vmatprep.subr.bf16.mxu0 0
  %418 = vmatpush1.bf16.msra.mxu0 %v328
  %419 = vmatprep.subr.bf16.mxu0 0
  %420 = vmatpush1.bf16.msra.mxu0 %v327
  %421 = vmatprep.subr.bf16.mxu0 0
  %422 = vmatpush1.bf16.msra.mxu0 %v326
  %423 = vmatprep.subr.bf16.mxu0 0
  %424 = vmatpush2.bf16.msra.mxu0 0
  %425 = vmatprep.subr.bf16.mxu0 0
  %426 = vmatpush2.bf16.msra.mxu0 0
  %427 = vmatprep.subr.bf16.mxu0 0
  %428 = vmatpush2.bf16.msra.mxu0 0
  %429 = vmatprep.subr.bf16.mxu0 0
  %430 = vmatpush2.bf16.msra.mxu0 0
  %431 = vmatprep.subr.bf16.mxu0 0
  %432 = vmatpush2.bf16.msra.mxu0 0
  %433 = vmatprep.subr.bf16.mxu0 0
  %434 = vmatpush2.bf16.msra.mxu0 0
  %435 = vmatprep.subr.bf16.mxu0 0
  %436 = vmatpush2.bf16.msra.mxu0 0
  %437 = vmatprep.subr.bf16.mxu0 0
  %438 = vmatpush2.bf16.msra.mxu0 0
  %439 = vmatprep.mubr.bf16.mxu0 0
  %440 = vmatmul.mubr.bf16.gmra.mxu0 %v160
  %v441 = vpop.f32.mrf.mxu0
  %v442 = vadd.f32 %v393, %v441
  %v443 = vpop.f32.mrf.mxu0
  %v444 = vpop.f32.mrf.mxu0
  %v445 = vadd.f32 %v396, %v444
  %v446 = vpop.f32.mrf.mxu0
  %447 = vmatprep.mubr.bf16.mxu0 0
  %448 = vmatmul.mubr.bf16.gmra.mxu0 %v163
  %v449 = vpop.f32.mrf.mxu0
  %v450 = vadd.f32 %v401, %v449
  %v451 = vpop.f32.mrf.mxu0
  %v452 = vpop.f32.mrf.mxu0
  %v453 = vadd.f32 %v404, %v452
  %v454 = vpop.f32.mrf.mxu0
  %455 = vdwg.mxu0
  %v456 = vld [vmem:[%s2] sm:$0x1]
  %v458 = vlaneseq
  %v459 = vshrl.u32 %v458, 7
  %v460 = vsub.s32 0, %v459
  %v461 = vrot.slane %v456, %v460
  %v463 = vmul.f32 %v442, %v461
  %v464 = vmul.f32 %v445, %v461
  %v465 = vmul.f32 %v450, %v461
  %v466 = vmul.f32 %v453, %v461
  %v467 = vld [vmem:[%s3] sm:$0x1]
  %v469 = vlaneseq
  %v470 = vshrl.u32 %v469, 7
  %v471 = vsub.s32 0, %v470
  %v472 = vrot.slane %v467, %v471
  %v474 = vadd.f32 %v463, %v472
  %v475 = vadd.f32 %v464, %v472
  %v476 = vadd.f32 %v465, %v472
  %v477 = vadd.f32 %v466, %v472
  %v478 = vmax.f32 %v474, 0.0
  %v479 = vmax.f32 %v475, 0.0
  %v480 = vmax.f32 %v476, 0.0
  %v481 = vmax.f32 %v477, 0.0
  %v482 = vpack.c.bf16 %v479, %v478
  %v483 = vpack.c.bf16 %v481, %v480
  %v484 = vld [vmem:[#allocation3] sm:$0x1]
  %v485 = vsel %vm33, 0, %v484
  %486 = vst [vmem:[#allocation3] sm:$0x1] %v485
  %v487 = vld [vmem:[#allocation3 + $0xc] sm:$0x1]
  %v488 = vsel %vm33, 0, %v487
  %489 = vst [vmem:[#allocation3 + $0xc] sm:$0x1] %v488
  %v490 = vld [vmem:[#allocation3 + $0x8] sm:$0x1]
  %v491 = vsel %vm41, 0, %v490
  %492 = vst [vmem:[#allocation3 + $0x8] sm:$0x1] %v491
  %v493 = vld [vmem:[#allocation3 + $0x14] sm:$0x1]
  %v494 = vsel %vm41, 0, %v493
  %495 = vst [vmem:[#allocation3 + $0x14] sm:$0x1] %v494
  %v498 = vunpack.c.l.b16 %v482
  %v499 = vunpack.c.h.b16 %v482
  %v500 = vunpack.c.l.b16 %v483
  %v501 = vunpack.c.h.b16 %v483
  %v502 = vpack.c.b16 %v498, %v498
  %v503 = vpack.c.b16 %v499, %v499
  %v504 = vpack.c.b16 %v500, %v500
  %v505 = vpack.c.b16 %v501, %v501
  %v507 = vshrl.u32 %v502, 16
  %v509 = vrot.slane %v507, 7
  %v510 = vshll.u32 %v502, 16
  %v512 = vor.u32 %v509, %v510
  %v513 = vrot.slane %v509, 4
  %v515 = vshrl.u32 %v503, 16
  %v517 = vrot.slane %v515, 7
  %v518 = vshll.u32 %v503, 16
  %v520 = vor.u32 %v517, %v518
  %v521 = vsel %vm49, %v513, %v520
  %v522 = vrot.slane %v517, 4
  %v524 = vshrl.u32 %v504, 16
  %v526 = vrot.slane %v524, 7
  %v527 = vshll.u32 %v504, 16
  %v529 = vor.u32 %v526, %v527
  %v530 = vrot.slane %v526, 4
  %v532 = vshrl.u32 %v505, 16
  %v534 = vrot.slane %v532, 7
  %v535 = vshll.u32 %v505, 16
  %v537 = vor.u32 %v534, %v535
  %v538 = vsel %vm49, %v530, %v537
  %v539 = vrot.slane %v534, 4
  %v546 = vld [vmem:[#allocation3] sm:$0xf]
  %v547 = vsel %vm91, %v512, %v546
  %548 = vst [vmem:[#allocation3] sm:$0xf] %v547
  %549 = vst [vmem:[#allocation3 + $0x4] sm:$0xf] %v521
  %v550 = vld [vmem:[#allocation3 + $0x8] sm:$0x1]
  %v551 = vsel %vm33, %v522, %v550
  %552 = vst [vmem:[#allocation3 + $0x8] sm:$0x1] %v551
  %v553 = vld [vmem:[#allocation3 + $0xc] sm:$0xf]
  %v554 = vsel %vm91, %v529, %v553
  %555 = vst [vmem:[#allocation3 + $0xc] sm:$0xf] %v554
  %556 = vst [vmem:[#allocation3 + $0x10] sm:$0xf] %v538
  %v557 = vld [vmem:[#allocation3 + $0x14] sm:$0x1]
  %v558 = vsel %vm33, %v539, %v557
  %559 = vst [vmem:[#allocation3 + $0x14] sm:$0x1] %v558
  %v560 = vld [vmem:[#allocation3] sm:$0xf]
  %v561 = vld [vmem:[#allocation3 + $0x4] sm:$0xf]
  %v562 = vld [vmem:[#allocation3 + $0x8] sm:$0x1]
  %v563 = vld [vmem:[#allocation3 + $0xc] sm:$0xf]
  %v564 = vld [vmem:[#allocation3 + $0x10] sm:$0xf]
  %v565 = vld [vmem:[#allocation3 + $0x14] sm:$0x1]
  %v570 = vunpack.c.l.b16 %v560
  %v571 = vunpack.c.l.b16 %v561
  %v572 = vunpack.c.l.b16 %v563
  %v573 = vunpack.c.l.b16 %v564
  %v574 = vpack.c.b16 %v571, %v570
  %v575 = vpack.c.b16 %v573, %v572
  %v580 = vunpack.c.l.b16 %v562
  %v581 = vunpack.c.l.b16 %v565
  %v582 = vpack.c.b16 %v580, %v580
  %v583 = vpack.c.b16 %v581, %v581
  %v585 = vshrl.u32 %v574, 16
  %v587 = vshll.u32 %v574, 16
  %v589 = vrot.slane %v587, 1
  %v590 = vor.u32 %v585, %v589
  %v592 = vshll.u32 %v582, 16
  %v594 = vrot.slane %v592, 1
  %v595 = vsel %vm130, %v590, %v594
  %v597 = vshrl.u32 %v575, 16
  %v599 = vshll.u32 %v575, 16
  %v601 = vrot.slane %v599, 1
  %v602 = vor.u32 %v597, %v601
  %v604 = vshll.u32 %v583, 16
  %v606 = vrot.slane %v604, 1
  %v607 = vsel %vm130, %v602, %v606
  %v610 = vrot.slane %v574, 1
  %v611 = vrot.slane %v582, 1
  %v612 = vsel %vm157, %v610, %v611
  %v613 = vrot.slane %v575, 1
  %v614 = vrot.slane %v583, 1
  %v615 = vsel %vm157, %v613, %v614
  %v618 = vld [vmem:[%s4] sm:$0xf]
  %v619 = vld [vmem:[%s4 + $0x4] sm:$0xf]
  %v620 = vld [vmem:[%s4 + $0x8] sm:$0xf]
  %v621 = vld [vmem:[%s4 + $0xc] sm:$0xf]
  %v622 = vld [vmem:[%s4 + $0x10] sm:$0xf]
  %v623 = vld [vmem:[%s4 + $0x14] sm:$0xf]
  %v624 = vld [vmem:[%s4 + $0x18] sm:$0xf]
  %v625 = vld [vmem:[%s4 + $0x1c] sm:$0xf]
  %v626 = vld [vmem:[%s4 + $0x20] sm:$0xf]
  %v627 = vld [vmem:[%s4 + $0x24] sm:$0xf]
  %v628 = vld [vmem:[%s4 + $0x28] sm:$0xf]
  %v629 = vld [vmem:[%s4 + $0x2c] sm:$0xf]
  %v630 = vld [vmem:[%s4 + $0x30] sm:$0xf]
  %v631 = vld [vmem:[%s4 + $0x34] sm:$0xf]
  %v632 = vld [vmem:[%s4 + $0x38] sm:$0xf]
  %v633 = vld [vmem:[%s4 + $0x3c] sm:$0xf]
  %v634 = vld [vmem:[%s4 + $0x40] sm:$0xf]
  %v635 = vld [vmem:[%s4 + $0x44] sm:$0xf]
  %v636 = vld [vmem:[%s4 + $0x48] sm:$0xf]
  %v637 = vld [vmem:[%s4 + $0x4c] sm:$0xf]
  %v638 = vld [vmem:[%s4 + $0x50] sm:$0xf]
  %v639 = vld [vmem:[%s4 + $0x54] sm:$0xf]
  %v640 = vld [vmem:[%s4 + $0x58] sm:$0xf]
  %v641 = vld [vmem:[%s4 + $0x5c] sm:$0xf]
  %v642 = vld [vmem:[%s4 + $0x60] sm:$0xf]
  %v643 = vld [vmem:[%s4 + $0x64] sm:$0xf]
  %v644 = vld [vmem:[%s4 + $0x68] sm:$0xf]
  %v645 = vld [vmem:[%s4 + $0x6c] sm:$0xf]
  %v646 = vld [vmem:[%s4 + $0x70] sm:$0xf]
  %v647 = vld [vmem:[%s4 + $0x74] sm:$0xf]
  %v648 = vld [vmem:[%s4 + $0x78] sm:$0xf]
  %v649 = vld [vmem:[%s4 + $0x7c] sm:$0xf]
  %v650 = vld [vmem:[%s4 + $0x80] sm:$0xf]
  %v651 = vld [vmem:[%s4 + $0x84] sm:$0xf]
  %v652 = vld [vmem:[%s4 + $0x88] sm:$0xf]
  %v653 = vld [vmem:[%s4 + $0x8c] sm:$0xf]
  %v654 = vld [vmem:[%s4 + $0x90] sm:$0xf]
  %v655 = vld [vmem:[%s4 + $0x94] sm:$0xf]
  %v656 = vld [vmem:[%s4 + $0x98] sm:$0xf]
  %v657 = vld [vmem:[%s4 + $0x9c] sm:$0xf]
  %v658 = vld [vmem:[%s4 + $0xa0] sm:$0xf]
  %v659 = vld [vmem:[%s4 + $0xa4] sm:$0xf]
  %v660 = vld [vmem:[%s4 + $0xa8] sm:$0xf]
  %v661 = vld [vmem:[%s4 + $0xac] sm:$0xf]
  %v662 = vld [vmem:[%s4 + $0xb0] sm:$0xf]
  %v663 = vld [vmem:[%s4 + $0xb4] sm:$0xf]
  %v664 = vld [vmem:[%s4 + $0xb8] sm:$0xf]
  %v665 = vld [vmem:[%s4 + $0xbc] sm:$0xf]
  %v714 = vunpack.c.l.b16 %v618
  %v715 = vunpack.c.l.b16 %v619
  %v716 = vunpack.c.l.b16 %v620
  %v717 = vunpack.c.l.b16 %v621
  %v718 = vunpack.c.l.b16 %v622
  %v719 = vunpack.c.l.b16 %v623
  %v720 = vunpack.c.l.b16 %v624
  %v721 = vunpack.c.l.b16 %v625
  %v722 = vunpack.c.l.b16 %v626
  %v723 = vunpack.c.l.b16 %v627
  %v724 = vunpack.c.l.b16 %v628
  %v725 = vunpack.c.l.b16 %v629
  %v726 = vunpack.c.l.b16 %v630
  %v727 = vunpack.c.l.b16 %v631
  %v728 = vunpack.c.l.b16 %v632
  %v729 = vunpack.c.l.b16 %v633
  %v730 = vunpack.c.l.b16 %v634
  %v731 = vunpack.c.l.b16 %v635
  %v732 = vunpack.c.l.b16 %v636
  %v733 = vunpack.c.l.b16 %v637
  %v734 = vunpack.c.l.b16 %v638
  %v735 = vunpack.c.l.b16 %v639
  %v736 = vunpack.c.l.b16 %v640
  %v737 = vunpack.c.l.b16 %v641
  %v738 = vunpack.c.l.b16 %v642
  %v739 = vunpack.c.l.b16 %v643
  %v740 = vunpack.c.l.b16 %v644
  %v741 = vunpack.c.l.b16 %v645
  %v742 = vunpack.c.l.b16 %v646
  %v743 = vunpack.c.l.b16 %v647
  %v744 = vunpack.c.l.b16 %v648
  %v745 = vunpack.c.l.b16 %v649
  %v746 = vunpack.c.l.b16 %v650
  %v747 = vunpack.c.l.b16 %v651
  %v748 = vunpack.c.l.b16 %v652
  %v749 = vunpack.c.l.b16 %v653
  %v750 = vunpack.c.l.b16 %v654
  %v751 = vunpack.c.l.b16 %v655
  %v752 = vunpack.c.l.b16 %v656
  %v753 = vunpack.c.l.b16 %v657
  %v754 = vunpack.c.l.b16 %v658
  %v755 = vunpack.c.l.b16 %v659
  %v756 = vunpack.c.l.b16 %v660
  %v757 = vunpack.c.l.b16 %v661
  %v758 = vunpack.c.l.b16 %v662
  %v759 = vunpack.c.l.b16 %v663
  %v760 = vunpack.c.l.b16 %v664
  %v761 = vunpack.c.l.b16 %v665
  %v762 = vpack.c.b16 %v715, %v714
  %v763 = vpack.c.b16 %v717, %v716
  %v764 = vpack.c.b16 %v719, %v718
  %v765 = vpack.c.b16 %v721, %v720
  %v766 = vpack.c.b16 %v723, %v722
  %v767 = vpack.c.b16 %v725, %v724
  %v768 = vpack.c.b16 %v727, %v726
  %v769 = vpack.c.b16 %v729, %v728
  %v770 = vpack.c.b16 %v731, %v730
  %v771 = vpack.c.b16 %v733, %v732
  %v772 = vpack.c.b16 %v735, %v734
  %v773 = vpack.c.b16 %v737, %v736
  %v774 = vpack.c.b16 %v739, %v738
  %v775 = vpack.c.b16 %v741, %v740
  %v776 = vpack.c.b16 %v743, %v742
  %v777 = vpack.c.b16 %v745, %v744
  %v778 = vpack.c.b16 %v747, %v746
  %v779 = vpack.c.b16 %v749, %v748
  %v780 = vpack.c.b16 %v751, %v750
  %v781 = vpack.c.b16 %v753, %v752
  %v782 = vpack.c.b16 %v755, %v754
  %v783 = vpack.c.b16 %v757, %v756
  %v784 = vpack.c.b16 %v759, %v758
  %v785 = vpack.c.b16 %v761, %v760
  %810 = vmatprep.subr.bf16.mxu0 0
  %811 = vmatpush1.bf16.msra.mxu0 %v769
  %812 = vmatprep.subr.bf16.mxu0 0
  %813 = vmatpush1.bf16.msra.mxu0 %v768
  %814 = vmatprep.subr.bf16.mxu0 0
  %815 = vmatpush1.bf16.msra.mxu0 %v767
  %816 = vmatprep.subr.bf16.mxu0 0
  %817 = vmatpush1.bf16.msra.mxu0 %v766
  %818 = vmatprep.subr.bf16.mxu0 0
  %819 = vmatpush1.bf16.msra.mxu0 %v765
  %820 = vmatprep.subr.bf16.mxu0 0
  %821 = vmatpush1.bf16.msra.mxu0 %v764
  %822 = vmatprep.subr.bf16.mxu0 0
  %823 = vmatpush1.bf16.msra.mxu0 %v763
  %824 = vmatprep.subr.bf16.mxu0 0
  %825 = vmatpush1.bf16.msra.mxu0 %v762
  %826 = vmatprep.subr.bf16.mxu0 0
  %827 = vmatpush2.bf16.msra.mxu0 %v777
  %828 = vmatprep.subr.bf16.mxu0 0
  %829 = vmatpush2.bf16.msra.mxu0 %v776
  %830 = vmatprep.subr.bf16.mxu0 0
  %831 = vmatpush2.bf16.msra.mxu0 %v775
  %832 = vmatprep.subr.bf16.mxu0 0
  %833 = vmatpush2.bf16.msra.mxu0 %v774
  %834 = vmatprep.subr.bf16.mxu0 0
  %835 = vmatpush2.bf16.msra.mxu0 %v773
  %836 = vmatprep.subr.bf16.mxu0 0
  %837 = vmatpush2.bf16.msra.mxu0 %v772
  %838 = vmatprep.subr.bf16.mxu0 0
  %839 = vmatpush2.bf16.msra.mxu0 %v771
  %840 = vmatprep.subr.bf16.mxu0 0
  %841 = vmatpush2.bf16.msra.mxu0 %v770
  %842 = vmatprep.mubr.bf16.mxu0 %v595
  %843 = vmatmul.mubr.bf16.gmra.mxu0 %v574
  %v844 = vpop.f32.mrf.mxu0
  %v845 = vadd.f32 0.0, %v844
  %v846 = vpop.f32.mrf.mxu0
  %v847 = vpop.f32.mrf.mxu0
  %v848 = vadd.f32 0.0, %v847
  %v849 = vpop.f32.mrf.mxu0
  %850 = vmatprep.mubr.bf16.mxu0 %v607
  %851 = vmatmul.mubr.bf16.gmra.mxu0 %v575
  %v852 = vpop.f32.mrf.mxu0
  %v853 = vadd.f32 0.0, %v852
  %v854 = vpop.f32.mrf.mxu0
  %v855 = vpop.f32.mrf.mxu0
  %v856 = vadd.f32 0.0, %v855
  %v857 = vpop.f32.mrf.mxu0
  %858 = vdwg.mxu0
  %859 = vmatprep.subr.bf16.mxu0 0
  %860 = vmatpush1.bf16.msra.mxu0 %v785
  %861 = vmatprep.subr.bf16.mxu0 0
  %862 = vmatpush1.bf16.msra.mxu0 %v784
  %863 = vmatprep.subr.bf16.mxu0 0
  %864 = vmatpush1.bf16.msra.mxu0 %v783
  %865 = vmatprep.subr.bf16.mxu0 0
  %866 = vmatpush1.bf16.msra.mxu0 %v782
  %867 = vmatprep.subr.bf16.mxu0 0
  %868 = vmatpush1.bf16.msra.mxu0 %v781
  %869 = vmatprep.subr.bf16.mxu0 0
  %870 = vmatpush1.bf16.msra.mxu0 %v780
  %871 = vmatprep.subr.bf16.mxu0 0
  %872 = vmatpush1.bf16.msra.mxu0 %v779
  %873 = vmatprep.subr.bf16.mxu0 0
  %874 = vmatpush1.bf16.msra.mxu0 %v778
  %875 = vmatprep.subr.bf16.mxu0 0
  %876 = vmatpush2.bf16.msra.mxu0 0
  %877 = vmatprep.subr.bf16.mxu0 0
  %878 = vmatpush2.bf16.msra.mxu0 0
  %879 = vmatprep.subr.bf16.mxu0 0
  %880 = vmatpush2.bf16.msra.mxu0 0
  %881 = vmatprep.subr.bf16.mxu0 0
  %882 = vmatpush2.bf16.msra.mxu0 0
  %883 = vmatprep.subr.bf16.mxu0 0
  %884 = vmatpush2.bf16.msra.mxu0 0
  %885 = vmatprep.subr.bf16.mxu0 0
  %886 = vmatpush2.bf16.msra.mxu0 0
  %887 = vmatprep.subr.bf16.mxu0 0
  %888 = vmatpush2.bf16.msra.mxu0 0
  %889 = vmatprep.subr.bf16.mxu0 0
  %890 = vmatpush2.bf16.msra.mxu0 0
  %891 = vmatprep.mubr.bf16.mxu0 0
  %892 = vmatmul.mubr.bf16.gmra.mxu0 %v612
  %v893 = vpop.f32.mrf.mxu0
  %v894 = vadd.f32 %v845, %v893
  %v895 = vpop.f32.mrf.mxu0
  %v896 = vpop.f32.mrf.mxu0
  %v897 = vadd.f32 %v848, %v896
  %v898 = vpop.f32.mrf.mxu0
  %899 = vmatprep.mubr.bf16.mxu0 0
  %900 = vmatmul.mubr.bf16.gmra.mxu0 %v615
  %v901 = vpop.f32.mrf.mxu0
  %v902 = vadd.f32 %v853, %v901
  %v903 = vpop.f32.mrf.mxu0
  %v904 = vpop.f32.mrf.mxu0
  %v905 = vadd.f32 %v856, %v904
  %v906 = vpop.f32.mrf.mxu0
  %907 = vdwg.mxu0
  %v908 = vld [vmem:[%s5] sm:$0x1]
  %v910 = vlaneseq
  %v911 = vshrl.u32 %v910, 7
  %v912 = vsub.s32 0, %v911
  %v913 = vrot.slane %v908, %v912
  %v915 = vmul.f32 %v894, %v913
  %v916 = vmul.f32 %v897, %v913
  %v917 = vmul.f32 %v902, %v913
  %v918 = vmul.f32 %v905, %v913
  %v919 = vld [vmem:[%s6] sm:$0x1]
  %v921 = vlaneseq
  %v922 = vshrl.u32 %v921, 7
  %v923 = vsub.s32 0, %v922
  %v924 = vrot.slane %v919, %v923
  %v926 = vadd.f32 %v915, %v924
  %v927 = vadd.f32 %v916, %v924
  %v928 = vadd.f32 %v917, %v924
  %v929 = vadd.f32 %v918, %v924
  %v930 = vmax.f32 %v926, 0.0
  %v931 = vmax.f32 %v927, 0.0
  %v932 = vmax.f32 %v928, 0.0
  %v933 = vmax.f32 %v929, 0.0
  %934 = vst [vmem:[%s7] sm:$0xff] %v930
  %935 = vst [vmem:[%s7 + $0x8] sm:$0xff] %v931
  %936 = vst [vmem:[%s7 + $0x10] sm:$0xff] %v932
  %937 = vst [vmem:[%s7 + $0x18] sm:$0xff] %v933
  // Predicated region
  $region30: #{decoder_forward.1} parent=0 // pred_check
    _
  $region31: #{decoder_forward.1} parent=0 // pred_check_branch
    %939 = sbr.rel (0) target = $region33
  $region32: #{decoder_forward.1} parent=0 // pred_region
    _
  $region33: #{decoder_forward.1} parent=0 // pred_fallthru
    _
  // Predicated region
  $region34: #{decoder_forward.1} parent=0 // pred_check
    _
  $region35: #{decoder_forward.1} parent=0 // pred_check_branch
    %941 = sbr.rel (0) target = $region37
  $region36: #{decoder_forward.1} parent=0 // pred_region
    _
  $region37: #{decoder_forward.1} parent=0 // pred_fallthru
    _

</llo_original>
